<compile_context>
chip_gen: v7x
topology: tpu7x:2x2x1
jax: 0.10.0
libtpu: 0.0.40
codegen_flags: <defaults>
</compile_context>

<pallas_src>
import jax
import jax.numpy as jnp
from jax.experimental import pallas as pl
from jax.experimental.pallas import tpu as pltpu

IN_NC = 2
OUT_NC = 8
CHANNEL = 64


def _round_up(x, m):
    return ((x + m - 1) // m) * m


def _hypanet_kernel(x_ref, w1_ref, b1_ref, w2_ref, b2_ref, w3_ref, b3_ref, o_ref):
    # Transposed layout: channels on sublanes, pixels on the 128-lane axis.
    # x_ref block: (1, IN_NC, tile); weights/biases are small full arrays with
    # constant index_maps -> resident in VMEM across grid steps.
    x = x_ref[0]                                            # (IN_NC, tile) f32
    w1 = w1_ref[...]                                        # (CHANNEL, IN_NC) f32
    cdt2 = w2_ref.dtype                                     # bf16 (fast) or f32
    cdt3 = w3_ref.dtype

    # Layer 1 (contraction depth K=2): fused VPU broadcast-FMA + bias + ReLU
    # + cast in ONE expression so only the (cdt2) h1 is materialized in VMEM.
    h1 = jnp.maximum(
        w1[:, 0:1] * x[0:1, :] + w1[:, 1:2] * x[1:2, :] + b1_ref[...],
        0.0,
    ).astype(cdt2)                                          # (CHANNEL, tile)

    # Layer 2 (64x64): MXU matmul, f32 accumulate; bias + ReLU + cast fused so
    # only the (cdt3) h2 is materialized.
    h2 = jnp.maximum(
        jnp.dot(w2_ref[...], h1, preferred_element_type=jnp.float32) + b2_ref[...],
        0.0,
    ).astype(cdt3)                                          # (CHANNEL, tile)

    # Layer 3 (64 -> 8): small-M MXU matmul, K=64 contraction.
    z = jnp.dot(w3_ref[...], h2, preferred_element_type=jnp.float32) + b3_ref[...]

    # Numerically-stable softplus + 1e-6, all f32 on the VPU/EUP.
    sp = jnp.maximum(z, 0.0) + jnp.log1p(jnp.exp(-jnp.abs(z)))
    o_ref[0] = (sp + 1e-6).astype(o_ref.dtype)              # lane-dense store


def hypanet_forward(x_nchw, params, *, tile_hw=16384, use_bf16=True,
                    core_parallel=False, vmem_limit_bytes=None):
    """x_nchw: (N, IN_NC, H, W) float32.  Returns 3 chunks along the channel
    dim exactly like torch.chunk(chunks=3, dim=1): sizes (3, 3, 2)."""
    w1t, b1, w2t, b2, w3t, b3 = params
    N, C, H, W = x_nchw.shape
    assert C == IN_NC

    HW = H * W
    # Pixel tile: multiple of 512 (128 minimum), clamped to the spatial extent.
    tile = min(_round_up(tile_hw, 512), _round_up(HW, 128))
    n_tiles = pl.cdiv(HW, tile)   # ragged last tile handled by Pallas masking

    # NCHW is already (N, C, HW): just a reshape, no pad / transpose / slice.
    x3 = x_nchw.reshape(N, IN_NC, HW)

    if use_bf16:
        # bf16 operands for the two MXU matmuls (f32 accumulate); biases and
        # all elementwise math stay f32.
        w2t = w2t.astype(jnp.bfloat16)
        w3t = w3t.astype(jnp.bfloat16)

    if vmem_limit_bytes is None:
        # Rough per-step live bytes: h1/h2 (f32 transient + cast copy), the
        # double-buffered input/output blocks, plus z.  Cap at 48 MiB (v7x-safe
        # with 64 MiB physical).  Raise explicitly on v5e/v6e for huge tiles.
        per_step = tile * (2 * CHANNEL * 6 + (IN_NC + OUT_NC) * 8 + OUT_NC * 4)
        vmem_limit_bytes = int(min(48 << 20, max(32 << 20, 2 * per_step)))

    grid = (N, n_tiles)
    pixel_sem = pltpu.CORE_PARALLEL if core_parallel else "parallel"

    flops = 2 * N * HW * (IN_NC * CHANNEL + CHANNEL * CHANNEL + CHANNEL * OUT_NC)
    transcendentals = 2 * OUT_NC * N * HW            # exp + log1p per output
    bytes_accessed = 4 * N * HW * (IN_NC + OUT_NC) + 4 * (
        CHANNEL * IN_NC + CHANNEL + CHANNEL * CHANNEL + CHANNEL
        + OUT_NC * CHANNEL + OUT_NC)
    cost = pl.CostEstimate(flops=flops, transcendentals=transcendentals,
                           bytes_accessed=bytes_accessed)

    out3 = pl.pallas_call(
        _hypanet_kernel,
        out_shape=jax.ShapeDtypeStruct((N, OUT_NC, HW), jnp.float32),
        grid_spec=pltpu.PrefetchScalarGridSpec(
            num_scalar_prefetch=0,
            grid=grid,
            in_specs=[
                pl.BlockSpec((1, IN_NC, tile), lambda n, t: (n, 0, t)),
                # Weights/biases: constant block index -> stay resident in VMEM.
                pl.BlockSpec((CHANNEL, IN_NC), lambda n, t: (0, 0)),
                pl.BlockSpec((CHANNEL, 1), lambda n, t: (0, 0)),
                pl.BlockSpec((CHANNEL, CHANNEL), lambda n, t: (0, 0)),
                pl.BlockSpec((CHANNEL, 1), lambda n, t: (0, 0)),
                pl.BlockSpec((OUT_NC, CHANNEL), lambda n, t: (0, 0)),
                pl.BlockSpec((OUT_NC, 1), lambda n, t: (0, 0)),
            ],
            out_specs=pl.BlockSpec((1, OUT_NC, tile), lambda n, t: (n, 0, t)),
        ),
        compiler_params=pltpu.CompilerParams(
            # Both axes independent; optionally force 2-TC split on the pixel
            # axis for v7x via core_parallel=True.
            dimension_semantics=("parallel", pixel_sem),
            vmem_limit_bytes=vmem_limit_bytes,
        ),
        cost_estimate=cost,
    )(x3, w1t, b1, w2t, b2, w3t, b3)

    out = out3.reshape(N, OUT_NC, H, W)
    c = -(-OUT_NC // 3)  # ceil(8/3) = 3 -> chunk sizes (3, 3, 2)
    return (out[:, 0:c], out[:, c:2 * c], out[:, 2 * c:])


def init_params(key):
    """Deterministic synthetic parameters matching the nn.Conv2d(1x1) shapes.

    A 1x1 Conv2d (weight (out, in, 1, 1)) on NCHW is a (out, in) matmul applied
    per pixel; weights are stored directly in that (out, in) layout so the
    kernel computes h = W @ x_pixels (channels-major, pixels on lanes)."""
    k1, k2, k3, k4, k5, k6 = jax.random.split(key, 6)
    w1t = jax.random.normal(k1, (CHANNEL, IN_NC), jnp.float32) * 0.2
    b1 = jax.random.normal(k2, (CHANNEL, 1), jnp.float32) * 0.1
    w2t = jax.random.normal(k3, (CHANNEL, CHANNEL), jnp.float32) * 0.05
    b2 = jax.random.normal(k4, (CHANNEL, 1), jnp.float32) * 0.1
    w3t = jax.random.normal(k5, (OUT_NC, CHANNEL), jnp.float32) * 0.05
    b3 = jax.random.normal(k6, (OUT_NC, 1), jnp.float32) * 0.1
    return (w1t, b1, w2t, b2, w3t, b3)


def _reference(x_nchw, params):
    """Pure-JAX f32 reference of the PyTorch forward for a sanity check."""
    w1t, b1, w2t, b2, w3t, b3 = params
    N, C, H, W = x_nchw.shape
    x = x_nchw.reshape(N, C, H * W)
    h1 = jnp.maximum(jnp.einsum('oc,ncp->nop', w1t, x) + b1[None], 0.0)
    h2 = jnp.maximum(jnp.einsum('oc,ncp->nop', w2t, h1) + b2[None], 0.0)
    z = jnp.einsum('oc,ncp->nop', w3t, h2) + b3[None]
    sp = jnp.logaddexp(z, 0.0) + 1e-6
    out = sp.reshape(N, OUT_NC, H, W)
    c = -(-OUT_NC // 3)
    return (out[:, 0:c], out[:, c:2 * c], out[:, 2 * c:])


if __name__ == "__main__":
    key = jax.random.PRNGKey(0)
    kx, kp = jax.random.split(key)

    # Small but representative: batch=2, in channels=2 (in_nc), 16x16 spatial.
    x = jax.random.normal(kx, (2, IN_NC, 16, 16), jnp.float32)
    params = init_params(kp)

    refs = _reference(x, params)

    # Exact f32 path: tight correctness check of the kernel structure.
    outs_f32 = jax.block_until_ready(hypanet_forward(x, params, use_bf16=False))
    for o, r in zip(outs_f32, refs):
        assert o.shape == r.shape, (o.shape, r.shape)
        assert jnp.allclose(o, r, atol=1e-5, rtol=1e-5)

    # Default fast path (bf16 MXU operands, f32 accumulate).
    outs = jax.block_until_ready(hypanet_forward(x, params))
    for o, r in zip(outs, refs):
        assert o.shape == r.shape, (o.shape, r.shape)
        assert jnp.allclose(o, r, atol=2e-2, rtol=2e-2)

    # Exercise a ragged last pixel tile (HW=12*12=144, not a multiple of 128).
    x_ragged = jax.random.normal(kx, (1, IN_NC, 12, 12), jnp.float32)
    refs_r = _reference(x_ragged, params)
    outs_r = jax.block_until_ready(
        hypanet_forward(x_ragged, params, use_bf16=False))
    for o, r in zip(outs_r, refs_r):
        assert o.shape == r.shape, (o.shape, r.shape)
        assert jnp.allclose(o, r, atol=1e-5, rtol=1e-5)

    assert outs[0].shape == (2, 3, 16, 16)
    assert outs[1].shape == (2, 3, 16, 16)
    assert outs[2].shape == (2, 2, 16, 16)

    print("KERNEL_OK")
</pallas_src>

<mosaic_0001>
module attributes {stable_mosaic.version = 11 : i64} {
  func.func @_hypanet_kernel(%arg0: i32, %arg1: i32, %arg2: memref<1x2x256xf32, #tpu.memory_space<vmem>>, %arg3: memref<64x2xf32, #tpu.memory_space<vmem>>, %arg4: memref<64x1xf32, #tpu.memory_space<vmem>>, %arg5: memref<64x64xf32, #tpu.memory_space<vmem>>, %arg6: memref<64x1xf32, #tpu.memory_space<vmem>>, %arg7: memref<8x64xf32, #tpu.memory_space<vmem>>, %arg8: memref<8x1xf32, #tpu.memory_space<vmem>>, %arg9: memref<1x8x256xf32, #tpu.memory_space<vmem>>) attributes {dimension_semantics = [#tpu.dimension_semantics<parallel>, #tpu.dimension_semantics<parallel>], iteration_bounds = array<i64: 2, 1>, scalar_prefetch = 0 : i64, scratch_operands = 0 : i64, tpu.core_type = #tpu.core_type<tc>, window_params = [{transform_indices = @transform_0, window_bounds = array<i64: 1, 2, 256>}, {pipeline_mode = #tpu.pipeline_mode<synchronous>, transform_indices = @transform_1, window_bounds = array<i64: 64, 2>}, {pipeline_mode = #tpu.pipeline_mode<synchronous>, transform_indices = @transform_2, window_bounds = array<i64: 64, 1>}, {pipeline_mode = #tpu.pipeline_mode<synchronous>, transform_indices = @transform_3, window_bounds = array<i64: 64, 64>}, {pipeline_mode = #tpu.pipeline_mode<synchronous>, transform_indices = @transform_4, window_bounds = array<i64: 64, 1>}, {pipeline_mode = #tpu.pipeline_mode<synchronous>, transform_indices = @transform_5, window_bounds = array<i64: 8, 64>}, {pipeline_mode = #tpu.pipeline_mode<synchronous>, transform_indices = @transform_6, window_bounds = array<i64: 8, 1>}, {transform_indices = @transform_7, window_bounds = array<i64: 1, 8, 256>}]} {
    %c0 = arith.constant 0 : index
    %c0_0 = arith.constant 0 : index
    %c0_1 = arith.constant 0 : index
    %0 = vector.load %arg2[%c0, %c0_0, %c0_1] : memref<1x2x256xf32, #tpu.memory_space<vmem>>, vector<1x2x256xf32>
    %1 = vector.shape_cast %0 : vector<1x2x256xf32> to vector<2x256xf32>
    %c0_2 = arith.constant 0 : index
    %c0_3 = arith.constant 0 : index
    %2 = vector.load %arg3[%c0_2, %c0_3] : memref<64x2xf32, #tpu.memory_space<vmem>>, vector<64x2xf32>
    %3 = vector.extract_strided_slice %2 {offsets = [0, 0], sizes = [64, 1], strides = [1, 1]} : vector<64x2xf32> to vector<64x1xf32>
    %4 = vector.extract_strided_slice %1 {offsets = [0, 0], sizes = [1, 256], strides = [1, 1]} : vector<2x256xf32> to vector<1x256xf32>
    %5 = vector.broadcast %3 : vector<64x1xf32> to vector<64x256xf32>
    %6 = vector.broadcast %4 : vector<1x256xf32> to vector<64x256xf32>
    %7 = arith.mulf %5, %6 : vector<64x256xf32>
    %8 = vector.extract_strided_slice %2 {offsets = [0, 1], sizes = [64, 1], strides = [1, 1]} : vector<64x2xf32> to vector<64x1xf32>
    %9 = vector.extract_strided_slice %1 {offsets = [1, 0], sizes = [1, 256], strides = [1, 1]} : vector<2x256xf32> to vector<1x256xf32>
    %10 = vector.broadcast %8 : vector<64x1xf32> to vector<64x256xf32>
    %11 = vector.broadcast %9 : vector<1x256xf32> to vector<64x256xf32>
    %12 = arith.mulf %10, %11 : vector<64x256xf32>
    %13 = arith.addf %7, %12 : vector<64x256xf32>
    %c0_4 = arith.constant 0 : index
    %c0_5 = arith.constant 0 : index
    %14 = vector.load %arg4[%c0_4, %c0_5] : memref<64x1xf32, #tpu.memory_space<vmem>>, vector<64x1xf32>
    %15 = vector.broadcast %14 : vector<64x1xf32> to vector<64x256xf32>
    %16 = arith.addf %13, %15 : vector<64x256xf32>
    %cst = arith.constant 0.000000e+00 : f32
    %17 = vector.broadcast %cst : f32 to vector<64x256xf32>
    %18 = arith.maximumf %16, %17 : vector<64x256xf32>
    %c0_6 = arith.constant 0 : index
    %c0_7 = arith.constant 0 : index
    %19 = vector.load %arg5[%c0_6, %c0_7] : memref<64x64xf32, #tpu.memory_space<vmem>>, vector<64x64xf32>
    %cst_8 = arith.constant dense<0.000000e+00> : vector<64x256xf32>
    %20 = tpu.matmul %19, %18, %cst_8 {dimension_numbers = #tpu.dot_dimension_numbers<[1], [0], [0], [1], [0, 0, 1, 1], [], []>} : vector<64x64xf32>, vector<64x256xf32>, vector<64x256xf32> -> vector<64x256xf32>
    %c0_9 = arith.constant 0 : index
    %c0_10 = arith.constant 0 : index
    %21 = vector.load %arg6[%c0_9, %c0_10] : memref<64x1xf32, #tpu.memory_space<vmem>>, vector<64x1xf32>
    %22 = vector.broadcast %21 : vector<64x1xf32> to vector<64x256xf32>
    %23 = arith.addf %20, %22 : vector<64x256xf32>
    %cst_11 = arith.constant 0.000000e+00 : f32
    %24 = vector.broadcast %cst_11 : f32 to vector<64x256xf32>
    %25 = arith.maximumf %23, %24 : vector<64x256xf32>
    %c0_12 = arith.constant 0 : index
    %c0_13 = arith.constant 0 : index
    %26 = vector.load %arg7[%c0_12, %c0_13] : memref<8x64xf32, #tpu.memory_space<vmem>>, vector<8x64xf32>
    %cst_14 = arith.constant dense<0.000000e+00> : vector<8x256xf32>
    %27 = tpu.matmul %26, %25, %cst_14 {dimension_numbers = #tpu.dot_dimension_numbers<[1], [0], [0], [1], [0, 0, 1, 1], [], []>} : vector<8x64xf32>, vector<64x256xf32>, vector<8x256xf32> -> vector<8x256xf32>
    %c0_15 = arith.constant 0 : index
    %c0_16 = arith.constant 0 : index
    %28 = vector.load %arg8[%c0_15, %c0_16] : memref<8x1xf32, #tpu.memory_space<vmem>>, vector<8x1xf32>
    %29 = vector.broadcast %28 : vector<8x1xf32> to vector<8x256xf32>
    %30 = arith.addf %27, %29 : vector<8x256xf32>
    %cst_17 = arith.constant 0.000000e+00 : f32
    %31 = vector.broadcast %cst_17 : f32 to vector<8x256xf32>
    %32 = arith.maximumf %30, %31 : vector<8x256xf32>
    %33 = math.absf %30 : vector<8x256xf32>
    %cst_18 = arith.constant 0.000000e+00 : f32
    %34 = vector.broadcast %cst_18 : f32 to vector<8x256xf32>
    %35 = arith.subf %34, %33 : vector<8x256xf32>
    %36 = math.exp %35 : vector<8x256xf32>
    %37 = math.log1p %36 : vector<8x256xf32>
    %38 = arith.addf %32, %37 : vector<8x256xf32>
    %cst_19 = arith.constant 9.99999997E-7 : f32
    %39 = vector.broadcast %cst_19 : f32 to vector<8x256xf32>
    %40 = arith.addf %38, %39 : vector<8x256xf32>
    %c0_20 = arith.constant 0 : index
    %c0_21 = arith.constant 0 : index
    %c0_22 = arith.constant 0 : index
    %41 = vector.load %arg9[%c0_20, %c0_21, %c0_22] : memref<1x8x256xf32, #tpu.memory_space<vmem>>, vector<1x8x256xf32>
    %42 = vector.shape_cast %41 : vector<1x8x256xf32> to vector<8x256xf32>
    %43 = vector.shape_cast %40 : vector<8x256xf32> to vector<1x8x256xf32>
    tpu.vector_store %arg9[%c0_20, %c0_21, %c0_22], %43 {strides = array<i32>} : memref<1x8x256xf32, #tpu.memory_space<vmem>>, vector<1x8x256xf32>,
    return
  }
  func.func @transform_0(%arg0: i32, %arg1: i32) -> (i32, i32, i32) {
    %c0_i32 = arith.constant 0 : i32
    %c0_i32_0 = arith.constant 0 : i32
    return %arg0, %c0_i32, %arg1 : i32, i32, i32
  }
  func.func @transform_1(%arg0: i32, %arg1: i32) -> (i32, i32) {
    %c0_i32 = arith.constant 0 : i32
    %c0_i32_0 = arith.constant 0 : i32
    %c0_i32_1 = arith.constant 0 : i32
    return %c0_i32, %c0_i32_0 : i32, i32
  }
  func.func @transform_2(%arg0: i32, %arg1: i32) -> (i32, i32) {
    %c0_i32 = arith.constant 0 : i32
    %c0_i32_0 = arith.constant 0 : i32
    %c0_i32_1 = arith.constant 0 : i32
    return %c0_i32, %c0_i32_0 : i32, i32
  }
  func.func @transform_3(%arg0: i32, %arg1: i32) -> (i32, i32) {
    %c0_i32 = arith.constant 0 : i32
    %c0_i32_0 = arith.constant 0 : i32
    %c0_i32_1 = arith.constant 0 : i32
    return %c0_i32, %c0_i32_0 : i32, i32
  }
  func.func @transform_4(%arg0: i32, %arg1: i32) -> (i32, i32) {
    %c0_i32 = arith.constant 0 : i32
    %c0_i32_0 = arith.constant 0 : i32
    %c0_i32_1 = arith.constant 0 : i32
    return %c0_i32, %c0_i32_0 : i32, i32
  }
  func.func @transform_5(%arg0: i32, %arg1: i32) -> (i32, i32) {
    %c0_i32 = arith.constant 0 : i32
    %c0_i32_0 = arith.constant 0 : i32
    %c0_i32_1 = arith.constant 0 : i32
    return %c0_i32, %c0_i32_0 : i32, i32
  }
  func.func @transform_6(%arg0: i32, %arg1: i32) -> (i32, i32) {
    %c0_i32 = arith.constant 0 : i32
    %c0_i32_0 = arith.constant 0 : i32
    %c0_i32_1 = arith.constant 0 : i32
    return %c0_i32, %c0_i32_0 : i32, i32
  }
  func.func @transform_7(%arg0: i32, %arg1: i32) -> (i32, i32, i32) {
    %c0_i32 = arith.constant 0 : i32
    %c0_i32_0 = arith.constant 0 : i32
    return %arg0, %c0_i32, %arg1 : i32, i32, i32
  }
}

</mosaic_0001>

<llo_original>
// kernel: tpu_custom_call.1
$region0: #{tpu_custom_call.1}
  #allocation0 [shape = 'u32[]', space=smem, size = 0x4, offset = 0x4, fixed_abs, tag = 'smem constant byte address 0x4 - core index']
  #allocation1 [shape = 'u32[144,128]{1,0:T(1,128)}', space=vmem, size = 0x12000, scoped, tag = 'internal scratch']
  %s0 = inlined_call_operand.vmem [shape: f32[2,2,256], index: 0, kind: input, shape index: {}]
  %s1 = inlined_call_operand.vmem [shape: f32[64,2], index: 1, kind: input, shape index: {}]
  %s2 = inlined_call_operand.vmem [shape: f32[64,1], index: 2, kind: input, shape index: {}]
  %s3 = inlined_call_operand.vmem [shape: f32[64,64], index: 3, kind: input, shape index: {}]
  %s4 = inlined_call_operand.vmem [shape: f32[64,1], index: 4, kind: input, shape index: {}]
  %s5 = inlined_call_operand.vmem [shape: f32[8,64], index: 5, kind: input, shape index: {}]
  %s6 = inlined_call_operand.vmem [shape: f32[8,1], index: 6, kind: input, shape index: {}]
  %s7 = inlined_call_operand.hbm [shape: f32[2,8,256], index: 7, kind: output, shape index: {}]
  %s8 = sld [smem:[#allocation0]]
  $region61: #{tpu_custom_call.1} parent=0
    _
  %s10 = ssub.s32 1, %s8
  %s11 = scalar_select 0, %s10, %s8
  $region1: #{tpu_custom_call.1} parent=0
    #allocation2 [shape = 'u8[16384]{0}', space=vmem, size = 0x4000, scoped, tag = 'output window, operand 0']
    #allocation3 [shape = 's32[2]{0}', space=sflag, size = 0x8, scoped, tag = 'scoped memory for tpu_custom_call.1']
    %12 = vsyncpa [#allocation3], 0
    %s13 = scalar_lea.sflag [#allocation3], 1
    %14 = vsyncpa %s13, 0
    loop: start=0, step=1, limit=4
    $region2: #{tpu_custom_call.1} parent=1 // loop_pre_header
      _
    $region3: #{tpu_custom_call.1} parent=1 // loop_header
      %s16 = sphi 0, %s20
      %p17 = scmp.ge.s32.totalorder %s16, 4
      %s23 = sphi 0, %s35
      %s24 = sphi 0, %s31
      %s25 = sphi 0, %s23
      %s26 = sphi 0, %s24
      %s27 = sphi 0, %s25
      %s28 = sphi 0, %s26
      %s40 = sphi 0, %s42
      %s43 = sphi 0, %s40
      %s44 = sphi 0, %s43
      %s60 = sphi 0, %s44
      %s64 = sphi 0, %s64
      %s66 = sphi 0, %s64
      %s67 = sphi 0, %s66
      %s81 = sphi 0, %s67
      %s85 = sphi 0, %s85
      %s87 = sphi 0, %s85
      %s88 = sphi 0, %s87
      %s102 = sphi 0, %s88
      %s106 = sphi 0, %s106
      %s108 = sphi 0, %s106
      %s109 = sphi 0, %s108
      %s123 = sphi 0, %s109
      %s127 = sphi 0, %s127
      %s129 = sphi 0, %s127
      %s130 = sphi 0, %s129
      %s144 = sphi 0, %s130
      %s148 = sphi 0, %s148
      %s150 = sphi 0, %s148
      %s151 = sphi 0, %s150
      %s165 = sphi 0, %s151
      %s169 = sphi 0, %s169
      %s171 = sphi 0, %s169
      %s172 = sphi 0, %s171
      %s186 = sphi 0, %s172
      %s194 = sphi 0, %s196
      %s197 = sphi 0, %s194
      %s198 = sphi 0, %s197
      %s214 = sphi 0, %s198
    $region4: #{tpu_custom_call.1} parent=1 // loop_header_branch
      %19 = sbr.rel (%p17) target = $region8
    $region5: #{tpu_custom_call.1} parent=1 // loop_body
      %s21 = ssub.s32 %s16, 1
      %s22 = ssub.s32 %s16, 2
      %s29 = sadd.s32 1, %s24
      %p30 = scmp.ge.s32.totalorder %s29, 1
      %s31 = scalar_select %p30, 0, %s29
      %s32 = sadd.s32 1, %s23
      %s33 = scalar_select %p30, %s32, %s23
      %p34 = scmp.ge.s32.totalorder %s33, 2
      %s35 = scalar_select %p34, 0, %s33
      %s36 = ssub.s32 %s23, %s35
      %s37 = ssub.s32 %s24, %s31
      %s38 = sor.u32 %s36, %s37
      %p39 = scmp.eq.s32.totalorder %s38, 0
      %s41 = sadd.s32 %s40, 1
      %s42 = scalar_select %p39, %s40, %s41
      %p45 = pneg %p39
      %p46 = scmp.eq.s32.totalorder %s16, 1
      %p47 = por %p45, %p46
      %p48 = scmp.ne.s32.totalorder %s40, %s43
      %p49 = scmp.eq.s32.totalorder %s16, 0
      %p50 = por %p48, %p49
      %p51 = scmp.ne.s32.totalorder %s40, %s43
      %p52 = scmp.eq.s32.totalorder %s21, 1
      %p53 = por %p51, %p52
      %p54 = scmp.ne.s32.totalorder %s43, %s44
      %p55 = scmp.eq.s32.totalorder %s21, 0
      %p56 = por %p54, %p55
      %p57 = scmp.ne.s32.totalorder %s43, %s44
      %p58 = scmp.eq.s32.totalorder %s22, 1
      %p59 = por %p57, %p58
      %p61 = scmp.ne.s32.totalorder %s44, %s60
      %p62 = scmp.eq.s32.totalorder %s22, 0
      %p63 = por %p61, %p62
      %s65 = sadd.s32 %s64, 1
      %p68 = scmp.eq.s32.totalorder %s16, 1
      %p69 = scmp.ne.s32.totalorder %s64, %s66
      %p70 = scmp.eq.s32.totalorder %s16, 0
      %p71 = por %p69, %p70
      %p72 = scmp.ne.s32.totalorder %s64, %s66
      %p73 = scmp.eq.s32.totalorder %s21, 1
      %p74 = por %p72, %p73
      %p75 = scmp.ne.s32.totalorder %s66, %s67
      %p76 = scmp.eq.s32.totalorder %s21, 0
      %p77 = por %p75, %p76
      %p78 = scmp.ne.s32.totalorder %s66, %s67
      %p79 = scmp.eq.s32.totalorder %s22, 1
      %p80 = por %p78, %p79
      %p82 = scmp.ne.s32.totalorder %s67, %s81
      %p83 = scmp.eq.s32.totalorder %s22, 0
      %p84 = por %p82, %p83
      %s86 = sadd.s32 %s85, 1
      %p89 = scmp.eq.s32.totalorder %s16, 1
      %p90 = scmp.ne.s32.totalorder %s85, %s87
      %p91 = scmp.eq.s32.totalorder %s16, 0
      %p92 = por %p90, %p91
      %p93 = scmp.ne.s32.totalorder %s85, %s87
      %p94 = scmp.eq.s32.totalorder %s21, 1
      %p95 = por %p93, %p94
      %p96 = scmp.ne.s32.totalorder %s87, %s88
      %p97 = scmp.eq.s32.totalorder %s21, 0
      %p98 = por %p96, %p97
      %p99 = scmp.ne.s32.totalorder %s87, %s88
      %p100 = scmp.eq.s32.totalorder %s22, 1
      %p101 = por %p99, %p100
      %p103 = scmp.ne.s32.totalorder %s88, %s102
      %p104 = scmp.eq.s32.totalorder %s22, 0
      %p105 = por %p103, %p104
      %s107 = sadd.s32 %s106, 1
      %p110 = scmp.eq.s32.totalorder %s16, 1
      %p111 = scmp.ne.s32.totalorder %s106, %s108
      %p112 = scmp.eq.s32.totalorder %s16, 0
      %p113 = por %p111, %p112
      %p114 = scmp.ne.s32.totalorder %s106, %s108
      %p115 = scmp.eq.s32.totalorder %s21, 1
      %p116 = por %p114, %p115
      %p117 = scmp.ne.s32.totalorder %s108, %s109
      %p118 = scmp.eq.s32.totalorder %s21, 0
      %p119 = por %p117, %p118
      %p120 = scmp.ne.s32.totalorder %s108, %s109
      %p121 = scmp.eq.s32.totalorder %s22, 1
      %p122 = por %p120, %p121
      %p124 = scmp.ne.s32.totalorder %s109, %s123
      %p125 = scmp.eq.s32.totalorder %s22, 0
      %p126 = por %p124, %p125
      %s128 = sadd.s32 %s127, 1
      %p131 = scmp.eq.s32.totalorder %s16, 1
      %p132 = scmp.ne.s32.totalorder %s127, %s129
      %p133 = scmp.eq.s32.totalorder %s16, 0
      %p134 = por %p132, %p133
      %p135 = scmp.ne.s32.totalorder %s127, %s129
      %p136 = scmp.eq.s32.totalorder %s21, 1
      %p137 = por %p135, %p136
      %p138 = scmp.ne.s32.totalorder %s129, %s130
      %p139 = scmp.eq.s32.totalorder %s21, 0
      %p140 = por %p138, %p139
      %p141 = scmp.ne.s32.totalorder %s129, %s130
      %p142 = scmp.eq.s32.totalorder %s22, 1
      %p143 = por %p141, %p142
      %p145 = scmp.ne.s32.totalorder %s130, %s144
      %p146 = scmp.eq.s32.totalorder %s22, 0
      %p147 = por %p145, %p146
      %s149 = sadd.s32 %s148, 1
      %p152 = scmp.eq.s32.totalorder %s16, 1
      %p153 = scmp.ne.s32.totalorder %s148, %s150
      %p154 = scmp.eq.s32.totalorder %s16, 0
      %p155 = por %p153, %p154
      %p156 = scmp.ne.s32.totalorder %s148, %s150
      %p157 = scmp.eq.s32.totalorder %s21, 1
      %p158 = por %p156, %p157
      %p159 = scmp.ne.s32.totalorder %s150, %s151
      %p160 = scmp.eq.s32.totalorder %s21, 0
      %p161 = por %p159, %p160
      %p162 = scmp.ne.s32.totalorder %s150, %s151
      %p163 = scmp.eq.s32.totalorder %s22, 1
      %p164 = por %p162, %p163
      %p166 = scmp.ne.s32.totalorder %s151, %s165
      %p167 = scmp.eq.s32.totalorder %s22, 0
      %p168 = por %p166, %p167
      %s170 = sadd.s32 %s169, 1
      %p173 = scmp.eq.s32.totalorder %s16, 1
      %p174 = scmp.ne.s32.totalorder %s169, %s171
      %p175 = scmp.eq.s32.totalorder %s16, 0
      %p176 = por %p174, %p175
      %p177 = scmp.ne.s32.totalorder %s169, %s171
      %p178 = scmp.eq.s32.totalorder %s21, 1
      %p179 = por %p177, %p178
      %p180 = scmp.ne.s32.totalorder %s171, %s172
      %p181 = scmp.eq.s32.totalorder %s21, 0
      %p182 = por %p180, %p181
      %p183 = scmp.ne.s32.totalorder %s171, %s172
      %p184 = scmp.eq.s32.totalorder %s22, 1
      %p185 = por %p183, %p184
      %p187 = scmp.ne.s32.totalorder %s172, %s186
      %p188 = scmp.eq.s32.totalorder %s22, 0
      %p189 = por %p187, %p188
      %s190 = ssub.s32 %s23, %s35
      %s191 = ssub.s32 %s24, %s31
      %s192 = sor.u32 %s190, %s191
      %p193 = scmp.eq.s32.totalorder %s192, 0
      %s195 = sadd.s32 %s194, 1
      %s196 = scalar_select %p193, %s194, %s195
      %p199 = pneg %p193
      %p200 = scmp.eq.s32.totalorder %s16, 1
      %p201 = por %p199, %p200
      %p202 = scmp.ne.s32.totalorder %s194, %s197
      %p203 = scmp.eq.s32.totalorder %s16, 0
      %p204 = por %p202, %p203
      %p205 = scmp.ne.s32.totalorder %s194, %s197
      %p206 = scmp.eq.s32.totalorder %s21, 1
      %p207 = por %p205, %p206
      %p208 = scmp.ne.s32.totalorder %s197, %s198
      %p209 = scmp.eq.s32.totalorder %s21, 0
      %p210 = por %p208, %p209
      %p211 = scmp.ne.s32.totalorder %s197, %s198
      %p212 = scmp.eq.s32.totalorder %s22, 1
      %p213 = por %p211, %p212
      %p215 = scmp.ne.s32.totalorder %s198, %s214
      %p216 = scmp.eq.s32.totalorder %s22, 0
      %p217 = por %p215, %p216
      %p218 = scmp.le.s32.totalorder 1, %s16
      %p219 = scmp.lt.s32.totalorder %s16, 3
      %p220 = pnand %p218, %p219
      %p221 = pneg %p220
      // Predicated region
      $region9: #{tpu_custom_call.1} parent=5 // pred_check
        _
      $region10: #{tpu_custom_call.1} parent=5 // pred_check_branch
        %223 = sbr.rel (%p220) target = $region12
      $region11: #{tpu_custom_call.1} parent=5 // pred_region
        %s224 = ssub.s32 %s16, 1
        // Predicated region
        $region13: #{tpu_custom_call.1} parent=11 // pred_check
          %p225 = pneg %p77
        $region14: #{tpu_custom_call.1} parent=11 // pred_check_branch
          %227 = sbr.rel (%p225) target = $region16
        $region15: #{tpu_custom_call.1} parent=11 // pred_region
          _
        $region16: #{tpu_custom_call.1} parent=11 // pred_fallthru
          _
        // Predicated region
        $region17: #{tpu_custom_call.1} parent=11 // pred_check
          %p228 = pneg %p98
        $region18: #{tpu_custom_call.1} parent=11 // pred_check_branch
          %230 = sbr.rel (%p228) target = $region20
        $region19: #{tpu_custom_call.1} parent=11 // pred_region
          _
        $region20: #{tpu_custom_call.1} parent=11 // pred_fallthru
          _
        // Predicated region
        $region21: #{tpu_custom_call.1} parent=11 // pred_check
          %p231 = pneg %p119
        $region22: #{tpu_custom_call.1} parent=11 // pred_check_branch
          %233 = sbr.rel (%p231) target = $region24
        $region23: #{tpu_custom_call.1} parent=11 // pred_region
          _
        $region24: #{tpu_custom_call.1} parent=11 // pred_fallthru
          _
        // Predicated region
        $region25: #{tpu_custom_call.1} parent=11 // pred_check
          %p234 = pneg %p140
        $region26: #{tpu_custom_call.1} parent=11 // pred_check_branch
          %236 = sbr.rel (%p234) target = $region28
        $region27: #{tpu_custom_call.1} parent=11 // pred_region
          _
        $region28: #{tpu_custom_call.1} parent=11 // pred_fallthru
          _
        // Predicated region
        $region29: #{tpu_custom_call.1} parent=11 // pred_check
          %p237 = pneg %p161
        $region30: #{tpu_custom_call.1} parent=11 // pred_check_branch
          %239 = sbr.rel (%p237) target = $region32
        $region31: #{tpu_custom_call.1} parent=11 // pred_region
          _
        $region32: #{tpu_custom_call.1} parent=11 // pred_fallthru
          _
        // Predicated region
        $region33: #{tpu_custom_call.1} parent=11 // pred_check
          %p240 = pneg %p182
        $region34: #{tpu_custom_call.1} parent=11 // pred_check_branch
          %242 = sbr.rel (%p240) target = $region36
        $region35: #{tpu_custom_call.1} parent=11 // pred_region
          _
        $region36: #{tpu_custom_call.1} parent=11 // pred_fallthru
          _
      $region12: #{tpu_custom_call.1} parent=5 // pred_fallthru
        _
      %p243 = scmp.lt.s32.totalorder %s16, 2
      // Predicated region
      $region37: #{tpu_custom_call.1} parent=5 // pred_check
        %p244 = pneg %p243
      $region38: #{tpu_custom_call.1} parent=5 // pred_check_branch
        %246 = sbr.rel (%p244) target = $region40
      $region39: #{tpu_custom_call.1} parent=5 // pred_region
        // Predicated region
        $region41: #{tpu_custom_call.1} parent=39 // pred_check
          %p247 = pneg %p50
        $region42: #{tpu_custom_call.1} parent=39 // pred_check_branch
          %249 = sbr.rel (%p247) target = $region44
        $region43: #{tpu_custom_call.1} parent=39 // pred_region
          %s250 = smul.u32 2, %s24
          %p251 = scmp.lt.s32.totalorder %s23, 1
          %s252 = scalar_select %p251, %s23, 1
          %p253 = scmp.lt.s32.totalorder %s250, 1
          %s254 = scalar_select %p253, %s250, 1
          %s255 = smul.addr %s252, 2
          %s256 = sadd.s32 %s254, %s255
          %s257 = smul.addr %s256, 2
          %s258 = scalar_lea.vmem %s0, %s257
          %s259 = smul.u32 2, %s24
        $region44: #{tpu_custom_call.1} parent=39 // pred_fallthru
          _
      $region40: #{tpu_custom_call.1} parent=5 // pred_fallthru
        _
      %p260 = scmp.le.s32.totalorder 1, %s16
      %p261 = scmp.lt.s32.totalorder %s16, 3
      %p262 = pnand %p260, %p261
      %p263 = pneg %p262
      // Predicated region
      $region45: #{tpu_custom_call.1} parent=5 // pred_check
        _
      $region46: #{tpu_custom_call.1} parent=5 // pred_check_branch
        %265 = sbr.rel (%p262) target = $region48
      $region47: #{tpu_custom_call.1} parent=5 // pred_region
        %s266 = ssub.s32 %s16, 1
        %s267 = smul.u32 2, %s26
        %p268 = scmp.lt.s32.totalorder %s25, 1
        %s269 = scalar_select %p268, %s25, 1
        %p270 = scmp.lt.s32.totalorder %s267, 1
        %s271 = scalar_select %p270, %s267, 1
        %s272 = smul.addr %s269, 2
        %s273 = sadd.s32 %s271, %s272
        %s274 = smul.addr %s273, 2
        %s275 = scalar_lea.vmem %s0, %s274
        %p276 = pneg %p56
        %p277 = pneg %p53
        %p278 = pneg %p77
        %p279 = pneg %p74
        %p280 = pneg %p98
        %p281 = pneg %p95
        %p282 = pneg %p119
        %p283 = pneg %p116
        %p284 = pneg %p140
        %p285 = pneg %p137
        %p286 = pneg %p161
        %p287 = pneg %p158
        %p288 = pneg %p182
        %p289 = pneg %p179
        %p290 = pneg %p210
        %p291 = pneg %p207
        %s292 = sand.u32 %s197, 1
        %s293 = scalar_lea.sflag [#allocation3], %s292
        %s294 = sand.u32 %s197, 1
        %s295 = smul.addr %s294, 16
        %s296 = scalar_lea.vmem [#allocation2], %s295
        %s297 = smul.u32 2, %s26
        %p298 = scmp.lt.s32.totalorder %s25, 1
        %s299 = scalar_select %p298, %s25, 1
        %p300 = scmp.lt.s32.totalorder %s297, 1
        %s301 = scalar_select %p300, %s297, 1
        %s302 = smul.addr %s299, 2
        %s303 = sadd.s32 %s301, %s302
        %s304 = smul.addr %s303, 2
        %s305 = scalar_lea.vmem %s0, %s304
        %s306 = smul.u32 2, %s26
        %s307 = smul.u32 2, %s26
        %v308 = vld [vmem:[%s305] sm:$0xf]
        %v309 = vld [vmem:[%s1] sm:$0xff]
        %v310 = vld [vmem:[%s1 + $0x8] sm:$0xff]
        %v311 = vld [vmem:[%s1 + $0x10] sm:$0xff]
        %v312 = vld [vmem:[%s1 + $0x18] sm:$0xff]
        %v313 = vld [vmem:[%s1 + $0x20] sm:$0xff]
        %v314 = vld [vmem:[%s1 + $0x28] sm:$0xff]
        %v315 = vld [vmem:[%s1 + $0x30] sm:$0xff]
        %v316 = vld [vmem:[%s1 + $0x38] sm:$0xff]
        %318 = vset.pattern.permute.xlu0 0
        %319 = vperm.xlu0 %318, %v309
        %v320 = vpop.permute.xlu0 %319
        %323 = vset.pattern.permute.xlu0 0
        %324 = vperm.xlu0 %323, %v310
        %v325 = vpop.permute.xlu0 %324
        %328 = vset.pattern.permute.xlu0 0
        %329 = vperm.xlu0 %328, %v311
        %v330 = vpop.permute.xlu0 %329
        %333 = vset.pattern.permute.xlu0 0
        %334 = vperm.xlu0 %333, %v312
        %v335 = vpop.permute.xlu0 %334
        %338 = vset.pattern.permute.xlu0 0
        %339 = vperm.xlu0 %338, %v313
        %v340 = vpop.permute.xlu0 %339
        %343 = vset.pattern.permute.xlu0 0
        %344 = vperm.xlu0 %343, %v314
        %v345 = vpop.permute.xlu0 %344
        %348 = vset.pattern.permute.xlu0 0
        %349 = vperm.xlu0 %348, %v315
        %v350 = vpop.permute.xlu0 %349
        %353 = vset.pattern.permute.xlu0 0
        %354 = vperm.xlu0 %353, %v316
        %v355 = vpop.permute.xlu0 %354
        %v358 = vlaneseq
        %v359 = vshrl.u32 %v358, 7
        %v360 = vsub.s32 0, %v359
        %v361 = vrot.slane %v308, %v360
        %v362 = vlaneseq
        %v363 = vshrl.u32 %v362, 7
        %v364 = vsub.s32 2, %v363
        %v365 = vrot.slane %v308, %v364
        %v368 = vlaneseq
        %v369 = vshrl.u32 %v368, 7
        %v370 = vsub.s32 0, %v369
        %v371 = vrot.slane %v361, %v370
        %v372 = vlaneseq
        %v373 = vshrl.u32 %v372, 7
        %v374 = vsub.s32 0, %v373
        %v375 = vrot.slane %v365, %v374
        %v376 = vmul.f32 %v320, %v371
        %v377 = vmul.f32 %v320, %v375
        %v378 = vmul.f32 %v325, %v371
        %v379 = vmul.f32 %v325, %v375
        %v380 = vmul.f32 %v330, %v371
        %v381 = vmul.f32 %v330, %v375
        %v382 = vmul.f32 %v335, %v371
        %v383 = vmul.f32 %v335, %v375
        %v384 = vmul.f32 %v340, %v371
        %v385 = vmul.f32 %v340, %v375
        %v386 = vmul.f32 %v345, %v371
        %v387 = vmul.f32 %v345, %v375
        %v388 = vmul.f32 %v350, %v371
        %v389 = vmul.f32 %v350, %v375
        %v390 = vmul.f32 %v355, %v371
        %v391 = vmul.f32 %v355, %v375
        %392 = vset.pattern.permute.xlu0 1
        %393 = vperm.xlu0 %392, %v309
        %v394 = vpop.permute.xlu0 %393
        %396 = vset.pattern.permute.xlu0 1
        %397 = vperm.xlu0 %396, %v310
        %v398 = vpop.permute.xlu0 %397
        %400 = vset.pattern.permute.xlu0 1
        %401 = vperm.xlu0 %400, %v311
        %v402 = vpop.permute.xlu0 %401
        %404 = vset.pattern.permute.xlu0 1
        %405 = vperm.xlu0 %404, %v312
        %v406 = vpop.permute.xlu0 %405
        %408 = vset.pattern.permute.xlu0 1
        %409 = vperm.xlu0 %408, %v313
        %v410 = vpop.permute.xlu0 %409
        %412 = vset.pattern.permute.xlu0 1
        %413 = vperm.xlu0 %412, %v314
        %v414 = vpop.permute.xlu0 %413
        %416 = vset.pattern.permute.xlu0 1
        %417 = vperm.xlu0 %416, %v315
        %v418 = vpop.permute.xlu0 %417
        %420 = vset.pattern.permute.xlu0 1
        %421 = vperm.xlu0 %420, %v316
        %v422 = vpop.permute.xlu0 %421
        %v424 = vlaneseq
        %v425 = vshrl.u32 %v424, 7
        %v426 = vsub.s32 1, %v425
        %v427 = vrot.slane %v308, %v426
        %v428 = vlaneseq
        %v429 = vshrl.u32 %v428, 7
        %v430 = vsub.s32 3, %v429
        %v431 = vrot.slane %v308, %v430
        %v434 = vlaneseq
        %v435 = vshrl.u32 %v434, 7
        %v436 = vsub.s32 1, %v435
        %v437 = vrot.slane %v427, %v436
        %v438 = vlaneseq
        %v439 = vshrl.u32 %v438, 7
        %v440 = vsub.s32 1, %v439
        %v441 = vrot.slane %v431, %v440
        %v442 = vmul.f32 %v394, %v437
        %v443 = vmul.f32 %v394, %v441
        %v444 = vmul.f32 %v398, %v437
        %v445 = vmul.f32 %v398, %v441
        %v446 = vmul.f32 %v402, %v437
        %v447 = vmul.f32 %v402, %v441
        %v448 = vmul.f32 %v406, %v437
        %v449 = vmul.f32 %v406, %v441
        %v450 = vmul.f32 %v410, %v437
        %v451 = vmul.f32 %v410, %v441
        %v452 = vmul.f32 %v414, %v437
        %v453 = vmul.f32 %v414, %v441
        %v454 = vmul.f32 %v418, %v437
        %v455 = vmul.f32 %v418, %v441
        %v456 = vmul.f32 %v422, %v437
        %v457 = vmul.f32 %v422, %v441
        %v458 = vadd.f32 %v376, %v442
        %v459 = vadd.f32 %v377, %v443
        %v460 = vadd.f32 %v378, %v444
        %v461 = vadd.f32 %v379, %v445
        %v462 = vadd.f32 %v380, %v446
        %v463 = vadd.f32 %v381, %v447
        %v464 = vadd.f32 %v382, %v448
        %v465 = vadd.f32 %v383, %v449
        %v466 = vadd.f32 %v384, %v450
        %v467 = vadd.f32 %v385, %v451
        %v468 = vadd.f32 %v386, %v452
        %v469 = vadd.f32 %v387, %v453
        %v470 = vadd.f32 %v388, %v454
        %v471 = vadd.f32 %v389, %v455
        %v472 = vadd.f32 %v390, %v456
        %v473 = vadd.f32 %v391, %v457
        %v474 = vld [vmem:[%s2] sm:$0xff]
        %v475 = vld [vmem:[%s2 + $0x8] sm:$0xff]
        %v476 = vld [vmem:[%s2 + $0x10] sm:$0xff]
        %v477 = vld [vmem:[%s2 + $0x18] sm:$0xff]
        %v478 = vld [vmem:[%s2 + $0x20] sm:$0xff]
        %v479 = vld [vmem:[%s2 + $0x28] sm:$0xff]
        %v480 = vld [vmem:[%s2 + $0x30] sm:$0xff]
        %v481 = vld [vmem:[%s2 + $0x38] sm:$0xff]
        %483 = vset.pattern.permute.xlu0 0
        %484 = vperm.xlu0 %483, %v474
        %v485 = vpop.permute.xlu0 %484
        %488 = vset.pattern.permute.xlu0 0
        %489 = vperm.xlu0 %488, %v475
        %v490 = vpop.permute.xlu0 %489
        %493 = vset.pattern.permute.xlu0 0
        %494 = vperm.xlu0 %493, %v476
        %v495 = vpop.permute.xlu0 %494
        %498 = vset.pattern.permute.xlu0 0
        %499 = vperm.xlu0 %498, %v477
        %v500 = vpop.permute.xlu0 %499
        %503 = vset.pattern.permute.xlu0 0
        %504 = vperm.xlu0 %503, %v478
        %v505 = vpop.permute.xlu0 %504
        %508 = vset.pattern.permute.xlu0 0
        %509 = vperm.xlu0 %508, %v479
        %v510 = vpop.permute.xlu0 %509
        %513 = vset.pattern.permute.xlu0 0
        %514 = vperm.xlu0 %513, %v480
        %v515 = vpop.permute.xlu0 %514
        %518 = vset.pattern.permute.xlu0 0
        %519 = vperm.xlu0 %518, %v481
        %v520 = vpop.permute.xlu0 %519
        %v522 = vadd.f32 %v458, %v485
        %v523 = vadd.f32 %v459, %v485
        %v524 = vadd.f32 %v460, %v490
        %v525 = vadd.f32 %v461, %v490
        %v526 = vadd.f32 %v462, %v495
        %v527 = vadd.f32 %v463, %v495
        %v528 = vadd.f32 %v464, %v500
        %v529 = vadd.f32 %v465, %v500
        %v530 = vadd.f32 %v466, %v505
        %v531 = vadd.f32 %v467, %v505
        %v532 = vadd.f32 %v468, %v510
        %v533 = vadd.f32 %v469, %v510
        %v534 = vadd.f32 %v470, %v515
        %v535 = vadd.f32 %v471, %v515
        %v536 = vadd.f32 %v472, %v520
        %v537 = vadd.f32 %v473, %v520
        %v538 = vmax.f32 %v522, 0.0
        %v539 = vmax.f32 %v523, 0.0
        %v540 = vmax.f32 %v524, 0.0
        %v541 = vmax.f32 %v525, 0.0
        %v542 = vmax.f32 %v526, 0.0
        %v543 = vmax.f32 %v527, 0.0
        %v544 = vmax.f32 %v528, 0.0
        %v545 = vmax.f32 %v529, 0.0
        %v546 = vmax.f32 %v530, 0.0
        %v547 = vmax.f32 %v531, 0.0
        %v548 = vmax.f32 %v532, 0.0
        %v549 = vmax.f32 %v533, 0.0
        %v550 = vmax.f32 %v534, 0.0
        %v551 = vmax.f32 %v535, 0.0
        %v552 = vmax.f32 %v536, 0.0
        %v553 = vmax.f32 %v537, 0.0
        %v554 = vld [vmem:[%s3] sm:$0xff]
        %v555 = vld [vmem:[%s3 + $0x8] sm:$0xff]
        %v556 = vld [vmem:[%s3 + $0x10] sm:$0xff]
        %v557 = vld [vmem:[%s3 + $0x18] sm:$0xff]
        %v558 = vld [vmem:[%s3 + $0x20] sm:$0xff]
        %v559 = vld [vmem:[%s3 + $0x28] sm:$0xff]
        %v560 = vld [vmem:[%s3 + $0x30] sm:$0xff]
        %v561 = vld [vmem:[%s3 + $0x38] sm:$0xff]
        %v562 = vld [vmem:[%s4] sm:$0xff]
        %v563 = vld [vmem:[%s4 + $0x8] sm:$0xff]
        %v564 = vld [vmem:[%s4 + $0x10] sm:$0xff]
        %v565 = vld [vmem:[%s4 + $0x18] sm:$0xff]
        %v566 = vld [vmem:[%s4 + $0x20] sm:$0xff]
        %v567 = vld [vmem:[%s4 + $0x28] sm:$0xff]
        %v568 = vld [vmem:[%s4 + $0x30] sm:$0xff]
        %v569 = vld [vmem:[%s4 + $0x38] sm:$0xff]
        %571 = vset.pattern.permute.xlu0 0
        %572 = vperm.xlu0 %571, %v562
        %v573 = vpop.permute.xlu0 %572
        %576 = vset.pattern.permute.xlu0 0
        %577 = vperm.xlu0 %576, %v563
        %v578 = vpop.permute.xlu0 %577
        %581 = vset.pattern.permute.xlu0 0
        %582 = vperm.xlu0 %581, %v564
        %v583 = vpop.permute.xlu0 %582
        %586 = vset.pattern.permute.xlu0 0
        %587 = vperm.xlu0 %586, %v565
        %v588 = vpop.permute.xlu0 %587
        %591 = vset.pattern.permute.xlu0 0
        %592 = vperm.xlu0 %591, %v566
        %v593 = vpop.permute.xlu0 %592
        %596 = vset.pattern.permute.xlu0 0
        %597 = vperm.xlu0 %596, %v567
        %v598 = vpop.permute.xlu0 %597
        %601 = vset.pattern.permute.xlu0 0
        %602 = vperm.xlu0 %601, %v568
        %v603 = vpop.permute.xlu0 %602
        %606 = vset.pattern.permute.xlu0 0
        %607 = vperm.xlu0 %606, %v569
        %v608 = vpop.permute.xlu0 %607
        %vm610 = vcmask 523264
        %v612 = vsel %vm610, %v554, 0
        %v615 = vsel %vm610, %v555, 0
        %v618 = vsel %vm610, %v556, 0
        %v621 = vsel %vm610, %v557, 0
        %v624 = vsel %vm610, %v558, 0
        %v627 = vsel %vm610, %v559, 0
        %v630 = vsel %vm610, %v560, 0
        %v633 = vsel %vm610, %v561, 0
        %635 = vmatprep.subr.mxu0 %v539
        %636 = vmatpush1.msra.mxu0 %v538
        %637 = vmatprep.subr.mxu0 %v541
        %638 = vmatpush1.msra.mxu0 %v540
        %639 = vmatprep.subr.mxu0 %v543
        %640 = vmatpush1.msra.mxu0 %v542
        %641 = vmatprep.subr.mxu0 %v545
        %642 = vmatpush1.msra.mxu0 %v544
        %643 = vmatprep.subr.mxu0 %v547
        %644 = vmatpush1.msra.mxu0 %v546
        %645 = vmatprep.subr.mxu0 %v549
        %646 = vmatpush1.msra.mxu0 %v548
        %647 = vmatprep.subr.mxu0 %v551
        %648 = vmatpush1.msra.mxu0 %v550
        %649 = vmatprep.subr.mxu0 %v553
        %650 = vmatpush1.msra.mxu0 %v552
        %651 = vmatprep.subr.mxu0 0.0
        %652 = vmatpush1.msra.mxu0 0.0
        %653 = vmatprep.subr.mxu0 0.0
        %654 = vmatpush1.msra.mxu0 0.0
        %655 = vmatprep.subr.mxu0 0.0
        %656 = vmatpush1.msra.mxu0 0.0
        %657 = vmatprep.subr.mxu0 0.0
        %658 = vmatpush1.msra.mxu0 0.0
        %659 = vmatprep.subr.mxu0 0.0
        %660 = vmatpush1.msra.mxu0 0.0
        %661 = vmatprep.subr.mxu0 0.0
        %662 = vmatpush1.msra.mxu0 0.0
        %663 = vmatprep.subr.mxu0 0.0
        %664 = vmatpush1.msra.mxu0 0.0
        %665 = vmatprep.subr.mxu0 0.0
        %666 = vmatpush1.msra.mxu0 0.0
        %667 = vmatprep.subr.mxu0 0.0
        %668 = vmatpush1.msra.mxu0 0.0
        %669 = vmatprep.subr.mxu0 0.0
        %670 = vmatpush1.msra.mxu0 0.0
        %671 = vmatprep.subr.mxu0 0.0
        %672 = vmatpush1.msra.mxu0 0.0
        %673 = vmatprep.subr.mxu0 0.0
        %674 = vmatpush1.msra.mxu0 0.0
        %675 = vmatprep.subr.mxu0 0.0
        %676 = vmatpush1.msra.mxu0 0.0
        %677 = vmatprep.subr.mxu0 0.0
        %678 = vmatpush1.msra.mxu0 0.0
        %679 = vmatprep.subr.mxu0 0.0
        %680 = vmatpush1.msra.mxu0 0.0
        %681 = vmatprep.subr.mxu0 0.0
        %682 = vmatpush1.msra.mxu0 0.0
        %683 = vmatprep.subr.mxu0 0.0
        %684 = vmatpush1.msra.mxu0 0.0
        %685 = vmatprep.subr.mxu0 0.0
        %686 = vmatpush1.msra.mxu0 0.0
        %687 = vmatprep.subr.mxu0 0.0
        %688 = vmatpush1.msra.mxu0 0.0
        %689 = vmatprep.subr.mxu0 0.0
        %690 = vmatpush1.msra.mxu0 0.0
        %691 = vmatprep.subr.mxu0 0.0
        %692 = vmatpush1.msra.mxu0 0.0
        %693 = vmatprep.subr.mxu0 0.0
        %694 = vmatpush1.msra.mxu0 0.0
        %695 = vmatprep.subr.mxu0 0.0
        %696 = vmatpush1.msra.mxu0 0.0
        %697 = vmatprep.subr.mxu0 0.0
        %698 = vmatpush1.msra.mxu0 0.0
        %699 = vmatprep.mubr.f32.mxu0 0.0
        %700 = vmatmul.mubr.f32.gmra.mrb[0].mxu0 %v612
        %v701 = vpop.f32.mrb[0].mxu0
        %v702 = vadd.f32 %v573, %v701
        %v703 = vpop.f32.mrb[0].mxu0
        %v704 = vadd.f32 %v573, %v703
        %705 = vmatprep.mubr.f32.mxu0 0.0
        %706 = vmatmul.mubr.f32.gmra.mrb[0].mxu0 %v615
        %v707 = vpop.f32.mrb[0].mxu0
        %v708 = vadd.f32 %v578, %v707
        %v709 = vpop.f32.mrb[0].mxu0
        %v710 = vadd.f32 %v578, %v709
        %711 = vmatprep.mubr.f32.mxu0 0.0
        %712 = vmatmul.mubr.f32.gmra.mrb[0].mxu0 %v618
        %v713 = vpop.f32.mrb[0].mxu0
        %v714 = vadd.f32 %v583, %v713
        %v715 = vpop.f32.mrb[0].mxu0
        %v716 = vadd.f32 %v583, %v715
        %717 = vmatprep.mubr.f32.mxu0 0.0
        %718 = vmatmul.mubr.f32.gmra.mrb[0].mxu0 %v621
        %v719 = vpop.f32.mrb[0].mxu0
        %v720 = vadd.f32 %v588, %v719
        %v721 = vpop.f32.mrb[0].mxu0
        %v722 = vadd.f32 %v588, %v721
        %723 = vmatprep.mubr.f32.mxu0 0.0
        %724 = vmatmul.mubr.f32.gmra.mrb[0].mxu0 %v624
        %v725 = vpop.f32.mrb[0].mxu0
        %v726 = vadd.f32 %v593, %v725
        %v727 = vpop.f32.mrb[0].mxu0
        %v728 = vadd.f32 %v593, %v727
        %729 = vmatprep.mubr.f32.mxu0 0.0
        %730 = vmatmul.mubr.f32.gmra.mrb[0].mxu0 %v627
        %v731 = vpop.f32.mrb[0].mxu0
        %v732 = vadd.f32 %v598, %v731
        %v733 = vpop.f32.mrb[0].mxu0
        %v734 = vadd.f32 %v598, %v733
        %735 = vmatprep.mubr.f32.mxu0 0.0
        %736 = vmatmul.mubr.f32.gmra.mrb[0].mxu0 %v630
        %v737 = vpop.f32.mrb[0].mxu0
        %v738 = vadd.f32 %v603, %v737
        %v739 = vpop.f32.mrb[0].mxu0
        %v740 = vadd.f32 %v603, %v739
        %741 = vmatprep.mubr.f32.mxu0 0.0
        %742 = vmatmul.mubr.f32.gmra.mrb[0].mxu0 %v633
        %v743 = vpop.f32.mrb[0].mxu0
        %v744 = vadd.f32 %v608, %v743
        %v745 = vpop.f32.mrb[0].mxu0
        %v746 = vadd.f32 %v608, %v745
        %747 = vdwg.mxu0
        %v748 = vmax.f32 %v702, 0.0
        %v749 = vmax.f32 %v704, 0.0
        %v750 = vmax.f32 %v708, 0.0
        %v751 = vmax.f32 %v710, 0.0
        %v752 = vmax.f32 %v714, 0.0
        %v753 = vmax.f32 %v716, 0.0
        %v754 = vmax.f32 %v720, 0.0
        %v755 = vmax.f32 %v722, 0.0
        %v756 = vmax.f32 %v726, 0.0
        %v757 = vmax.f32 %v728, 0.0
        %v758 = vmax.f32 %v732, 0.0
        %v759 = vmax.f32 %v734, 0.0
        %v760 = vmax.f32 %v738, 0.0
        %v761 = vmax.f32 %v740, 0.0
        %v762 = vmax.f32 %v744, 0.0
        %v763 = vmax.f32 %v746, 0.0
        %v764 = vld [vmem:[%s5] sm:$0xff]
        %v765 = vld [vmem:[%s6] sm:$0xff]
        %767 = vset.pattern.permute.xlu0 0
        %768 = vperm.xlu0 %767, %v765
        %v769 = vpop.permute.xlu0 %768
        %v772 = vsel %vm610, %v764, 0
        %774 = vmatprep.subr.mxu0 %v749
        %775 = vmatpush1.msra.mxu0 %v748
        %776 = vmatprep.subr.mxu0 %v751
        %777 = vmatpush1.msra.mxu0 %v750
        %778 = vmatprep.subr.mxu0 %v753
        %779 = vmatpush1.msra.mxu0 %v752
        %780 = vmatprep.subr.mxu0 %v755
        %781 = vmatpush1.msra.mxu0 %v754
        %782 = vmatprep.subr.mxu0 %v757
        %783 = vmatpush1.msra.mxu0 %v756
        %784 = vmatprep.subr.mxu0 %v759
        %785 = vmatpush1.msra.mxu0 %v758
        %786 = vmatprep.subr.mxu0 %v761
        %787 = vmatpush1.msra.mxu0 %v760
        %788 = vmatprep.subr.mxu0 %v763
        %789 = vmatpush1.msra.mxu0 %v762
        %790 = vmatprep.subr.mxu0 0.0
        %791 = vmatpush1.msra.mxu0 0.0
        %792 = vmatprep.subr.mxu0 0.0
        %793 = vmatpush1.msra.mxu0 0.0
        %794 = vmatprep.subr.mxu0 0.0
        %795 = vmatpush1.msra.mxu0 0.0
        %796 = vmatprep.subr.mxu0 0.0
        %797 = vmatpush1.msra.mxu0 0.0
        %798 = vmatprep.subr.mxu0 0.0
        %799 = vmatpush1.msra.mxu0 0.0
        %800 = vmatprep.subr.mxu0 0.0
        %801 = vmatpush1.msra.mxu0 0.0
        %802 = vmatprep.subr.mxu0 0.0
        %803 = vmatpush1.msra.mxu0 0.0
        %804 = vmatprep.subr.mxu0 0.0
        %805 = vmatpush1.msra.mxu0 0.0
        %806 = vmatprep.subr.mxu0 0.0
        %807 = vmatpush1.msra.mxu0 0.0
        %808 = vmatprep.subr.mxu0 0.0
        %809 = vmatpush1.msra.mxu0 0.0
        %810 = vmatprep.subr.mxu0 0.0
        %811 = vmatpush1.msra.mxu0 0.0
        %812 = vmatprep.subr.mxu0 0.0
        %813 = vmatpush1.msra.mxu0 0.0
        %814 = vmatprep.subr.mxu0 0.0
        %815 = vmatpush1.msra.mxu0 0.0
        %816 = vmatprep.subr.mxu0 0.0
        %817 = vmatpush1.msra.mxu0 0.0
        %818 = vmatprep.subr.mxu0 0.0
        %819 = vmatpush1.msra.mxu0 0.0
        %820 = vmatprep.subr.mxu0 0.0
        %821 = vmatpush1.msra.mxu0 0.0
        %822 = vmatprep.subr.mxu0 0.0
        %823 = vmatpush1.msra.mxu0 0.0
        %824 = vmatprep.subr.mxu0 0.0
        %825 = vmatpush1.msra.mxu0 0.0
        %826 = vmatprep.subr.mxu0 0.0
        %827 = vmatpush1.msra.mxu0 0.0
        %828 = vmatprep.subr.mxu0 0.0
        %829 = vmatpush1.msra.mxu0 0.0
        %830 = vmatprep.subr.mxu0 0.0
        %831 = vmatpush1.msra.mxu0 0.0
        %832 = vmatprep.subr.mxu0 0.0
        %833 = vmatpush1.msra.mxu0 0.0
        %834 = vmatprep.subr.mxu0 0.0
        %835 = vmatpush1.msra.mxu0 0.0
        %836 = vmatprep.subr.mxu0 0.0
        %837 = vmatpush1.msra.mxu0 0.0
        %838 = vmatprep.mubr.f32.mxu0 0.0
        %839 = vmatmul.mubr.f32.gmra.mrb[0].mxu0 %v772
        %v840 = vpop.f32.mrb[0].mxu0
        %v841 = vadd.f32 %v769, %v840
        %v842 = vpop.f32.mrb[0].mxu0
        %v843 = vadd.f32 %v769, %v842
        %844 = vdwg.mxu0
        %v845 = vmax.f32 %v841, 0.0
        %v846 = vmax.f32 %v843, 0.0
        %v847 = vand.u32 2147483647, %v841
        %v848 = vand.u32 2147483647, %v843
        %v849 = vsub.f32 0.0, %v847
        %v850 = vsub.f32 0.0, %v848
        %v851 = vmul.f32 %v849, 1.442695
        %v852 = vpow.pop %v851
        %v853 = vmul.f32 %v850, 1.442695
        %v854 = vpow.pop %v853
        %v855 = vadd.f32 %v852, 1.0
        %v856 = vlog2.pop %v855
        %v857 = vmul.f32 %v856, 0.6931472
        %v858 = vmul.f32 -0.5, %v852
        %v859 = vadd.f32 %v858, 1.0
        %v860 = vmul.f32 %v859, %v852
        %v861 = vand.u32 2147483647, %v852
        %vm862 = vcmp.lt.f32.partialorder %v861, 0.0004427343
        %v863 = vsel %vm862, %v860, %v857
        %v864 = vadd.f32 %v854, 1.0
        %v865 = vlog2.pop %v864
        %v866 = vmul.f32 %v865, 0.6931472
        %v867 = vmul.f32 -0.5, %v854
        %v868 = vadd.f32 %v867, 1.0
        %v869 = vmul.f32 %v868, %v854
        %v870 = vand.u32 2147483647, %v854
        %vm871 = vcmp.lt.f32.partialorder %v870, 0.0004427343
        %v872 = vsel %vm871, %v869, %v866
        %v873 = vadd.f32 %v845, %v863
        %v874 = vadd.f32 %v846, %v872
        %v875 = vadd.f32 %v873, 1e-06
        %v876 = vadd.f32 %v874, 1e-06
        %877 = vst [vmem:[%s296] sm:$0xff] %v875
        %878 = vst [vmem:[%s296 + $0x8] sm:$0xff] %v876
        %s879 = sand.u32 %s197, 1
        %s880 = scalar_lea.sflag [#allocation3], %s879
        %s881 = sand.u32 %s197, 1
        %s882 = smul.addr %s881, 16
        %s883 = scalar_lea.vmem [#allocation2], %s882
        // Predicated region
        $region49: #{tpu_custom_call.1} parent=47 // pred_check
          %p884 = pneg %p207
        $region50: #{tpu_custom_call.1} parent=47 // pred_check_branch
          %886 = sbr.rel (%p884) target = $region52
        $region51: #{tpu_custom_call.1} parent=47 // pred_region
          %s887 = smul.u32 2, %s26
          %s889 = ssub.s32 256, 256
          %890 = vsyncadd %s880, %s889
          %s891 = smul.addr %s25, 2
          %s892 = sadd.s32 %s887, %s891
          %s893 = smul.addr %s892, 128
          %s894 = scalar_lea.hbm %s7, %s893
          %s896 = sshll.u32 %s883, 4
          %s897 = int_to_ptr.vmem [resolvable:$true] %s896
          %899 = dma.vmem_to_hbm [thread:$0]  %s897, 256, %s894, %s880
        $region52: #{tpu_custom_call.1} parent=47 // pred_fallthru
          _
      $region48: #{tpu_custom_call.1} parent=5 // pred_fallthru
        _
      %p900 = scmp.le.s32.totalorder 2, %s16
      // Predicated region
      $region53: #{tpu_custom_call.1} parent=5 // pred_check
        %p901 = pneg %p900
      $region54: #{tpu_custom_call.1} parent=5 // pred_check_branch
        %903 = sbr.rel (%p901) target = $region56
      $region55: #{tpu_custom_call.1} parent=5 // pred_region
        %s904 = ssub.s32 %s16, 2
        // Predicated region
        $region57: #{tpu_custom_call.1} parent=55 // pred_check
          %p905 = pneg %p213
        $region58: #{tpu_custom_call.1} parent=55 // pred_check_branch
          %907 = sbr.rel (%p905) target = $region60
        $region59: #{tpu_custom_call.1} parent=55 // pred_region
          %s908 = sand.u32 %s198, 1
          %s909 = scalar_lea.sflag [#allocation3], %s908
          %s910 = sand.u32 %s198, 1
          %s911 = smul.addr %s910, 16
          %s912 = scalar_lea.vmem [#allocation2], %s911
          %913 = dma.done %s909, 256
        $region60: #{tpu_custom_call.1} parent=55 // pred_fallthru
          _
      $region56: #{tpu_custom_call.1} parent=5 // pred_fallthru
        _
    $region6: #{tpu_custom_call.1} parent=1 // loop_footer
      %s20 = sadd.s32 1, %s16
    $region7: #{tpu_custom_call.1} parent=1 // loop_footer_branch
      %15 = sbr.rel target = $region3
    $region8: #{tpu_custom_call.1} parent=1 // loop_exit
      _
    %914 = vsyncpa [#allocation3], 1
    %s915 = scalar_lea.sflag [#allocation3], 1
    %916 = vsyncpa %s915, 1

</llo_original>
